<compile_context>
chip_gen: v6e
topology: v6e:2x2x1
jax: 0.10.0
libtpu: 0.0.40
codegen_flags: <defaults>
</compile_context>

<pallas_src>
import functools

import jax
import jax.numpy as jnp
import numpy as np
from jax.experimental import pallas as pl
from jax.experimental.pallas import tpu as pltpu


# ---------------------------------------------------------------------------
# Exact GELU (erf-based, like nn.GELU() default).
# Abramowitz & Stegun 7.1.26:  |erf error| <= 1.5e-7 (~ f32 eps).
# ---------------------------------------------------------------------------
_SQRT_HALF = 0.7071067811865476


def _erf_f32(x):
    a1, a2, a3, a4, a5 = (0.254829592, -0.284496736, 1.421413741,
                          -1.453152027, 1.061405429)
    p = 0.3275911
    ax = jnp.abs(x)
    # EUP approx reciprocal instead of a VALU divide: the EUP slot is nearly
    # idle here (one exp per element) while the VALU carries the polynomial.
    t = pl.reciprocal(1.0 + p * ax, approx=True)
    poly = ((((a5 * t + a4) * t + a3) * t + a2) * t + a1) * t
    y = 1.0 - poly * jnp.exp(-ax * ax)
    return jnp.where(x < 0.0, -y, y)


def _gelu_exact(x):
    return 0.5 * x * (1.0 + _erf_f32(x * _SQRT_HALF))


# ---------------------------------------------------------------------------
# Kernels
# ---------------------------------------------------------------------------
def _transition_kernel_fused(x_ref, w1_ref, b1_ref, w2_ref, b2_ref, o_ref, *,
                             mxu_dtype):
    """1-D grid over row tiles; full weights resident in VMEM."""
    h = jnp.dot(x_ref[...].astype(mxu_dtype), w1_ref[...].astype(mxu_dtype),
                preferred_element_type=jnp.float32)
    h = _gelu_exact(h + b1_ref[...])
    # TODO(synk): training-mode dropout would go here.
    y = jnp.dot(h.astype(mxu_dtype), w2_ref[...].astype(mxu_dtype),
                preferred_element_type=jnp.float32)
    o_ref[...] = (y + b2_ref[...]).astype(o_ref.dtype)


def _transition_kernel_tiled(x_ref, w1_ref, b1_ref, w2_ref, b2_ref, o_ref, *,
                             mxu_dtype):
    """2-D grid (rows, hidden tiles); accumulate directly into f32 output."""
    k = pl.program_id(1)
    h = jnp.dot(x_ref[...].astype(mxu_dtype), w1_ref[...].astype(mxu_dtype),
                preferred_element_type=jnp.float32)
    h = _gelu_exact(h + b1_ref[...])
    part = jnp.dot(h.astype(mxu_dtype), w2_ref[...].astype(mxu_dtype),
                   preferred_element_type=jnp.float32)

    @pl.when(k == 0)
    def _():
        o_ref[...] = part + b2_ref[...]

    @pl.when(k != 0)
    def _():
        o_ref[...] += part


# ---------------------------------------------------------------------------
# Wrapper helpers
# ---------------------------------------------------------------------------
def _round_up(v, m):
    return (v + m - 1) // m * m


def _vmem_capacity_bytes():
    try:
        return int(pltpu.get_tpu_info().vmem_capacity_bytes)
    except Exception:
        return 64 * 1024 * 1024          # conservative (v7x per-TC VMEM)


def _pick_bm(m, block_m):
    if m < 16:
        return m                          # single, full-extent row tile
    # >= 2 row tiles so the "parallel" axis shards across both v7x TCs.
    return min(_round_up(block_m, 8), _round_up(pl.cdiv(m, 2), 8))


def _fused_vmem_bytes(bm, d_in, hidden, itemsize):
    weights = 2 * d_in * hidden * 4 * 2          # W1 + W2, double-buffered
    biases = (hidden + d_in) * 4 * 2
    xo_tiles = bm * d_in * (itemsize + itemsize) * 2
    h_tmp = bm * hidden * 8                       # f32 h + bf16 casts (generous)
    return weights + biases + xo_tiles + h_tmp


def _tiled_vmem_bytes(bm, bh, d_in, itemsize):
    weights = 2 * bh * d_in * 4 * 2
    biases = (bh + d_in) * 4 * 2
    xo_tiles = bm * d_in * (itemsize + 4) * 2
    h_tmp = bm * bh * 8
    return weights + biases + xo_tiles + h_tmp


def _pick_block_h(h_pad, block_h, budget, bm, d_in):
    """Largest 128-multiple divisor of h_pad within block_h and VMEM budget."""
    per_bh = 2 * d_in * 4 * 2 + 4 * 2 + bm * 8
    max_bh = max(128, budget // max(per_bh, 1))
    cap = min(block_h, max_bh, h_pad)
    cap = max(128, cap - cap % 128)
    cand = cap
    while cand >= 128:
        if h_pad % cand == 0:
            return cand
        cand -= 128
    return 128


# ---------------------------------------------------------------------------
# Public wrapper:  y = Linear2( GELU( Linear1(x) ) )
# weights stored transposed (x @ W^T form): w1 (d_in, n*d_in), w2 (n*d_in, d_in)
# ---------------------------------------------------------------------------
def transition_forward(x, params, *, block_m=1024, block_h=512,
                       use_bf16_matmul=True, force_hidden_tiling=False):
    w1, b1, w2, b2 = params              # (d_in,H), (1,H), (H,d_in), (1,d_in)
    d_in = x.shape[-1]
    hidden = w1.shape[1]
    lead = x.shape[:-1]
    mxu_dtype = jnp.bfloat16 if use_bf16_matmul else jnp.float32

    x2 = x.reshape(-1, d_in)
    m = x2.shape[0]
    itemsize = x2.dtype.itemsize

    vmem_cap = _vmem_capacity_bytes()
    budget = vmem_cap * 3 // 4           # leave headroom for compiler temps

    bm = _pick_bm(m, block_m)
    # Shrink the row tile until the fused (weights-resident) plan fits VMEM.
    while bm > 8 and _fused_vmem_bytes(bm, d_in, hidden, itemsize) > budget:
        bm = max(8, _round_up(bm // 2, 8))
    grid_m = pl.cdiv(m, bm)              # no jnp.pad: tail row tile is partial

    use_fused = (not force_hidden_tiling) and (
        _fused_vmem_bytes(bm, d_in, hidden, itemsize) <= budget)

    if use_fused:
        est = _fused_vmem_bytes(bm, d_in, hidden, itemsize)
        out = pl.pallas_call(
            functools.partial(_transition_kernel_fused, mxu_dtype=mxu_dtype),
            out_shape=jax.ShapeDtypeStruct((m, d_in), x.dtype),
            grid_spec=pltpu.PrefetchScalarGridSpec(
                num_scalar_prefetch=0,
                grid=(grid_m,),
                in_specs=[
                    pl.BlockSpec((bm, d_in), lambda i: (i, 0)),      # x rows
                    pl.BlockSpec((d_in, hidden), lambda i: (0, 0)),  # W1 (resident)
                    pl.BlockSpec((1, hidden), lambda i: (0, 0)),     # b1 (resident)
                    pl.BlockSpec((hidden, d_in), lambda i: (0, 0)),  # W2 (resident)
                    pl.BlockSpec((1, d_in), lambda i: (0, 0)),       # b2 (resident)
                ],
                out_specs=pl.BlockSpec((bm, d_in), lambda i: (i, 0)),
            ),
            compiler_params=pltpu.CompilerParams(
                dimension_semantics=("parallel",),
                vmem_limit_bytes=max(32 * 1024 * 1024,
                                     min(int(vmem_cap * 0.9), int(est * 2))),
            ),
        )(x2, w1, b1, w2, b2)
        return out.reshape(*lead, d_in)

    # ---------------- fallback: hidden contraction tiled -------------------
    # Pad hidden to a multiple of 128 so a lane-aligned bh always divides it.
    # Zero-padded W1 columns / b1 give GELU(0)=0 and zero-padded W2 rows, so
    # the padded slice contributes exactly 0 to the contraction.
    h_pad = _round_up(hidden, 128)
    if h_pad != hidden:
        w1 = jnp.pad(w1, ((0, 0), (0, h_pad - hidden)))
        b1 = jnp.pad(b1, ((0, 0), (0, h_pad - hidden)))
        w2 = jnp.pad(w2, ((0, h_pad - hidden), (0, 0)))
    bh = _pick_block_h(h_pad, block_h, budget, bm, d_in)
    est = _tiled_vmem_bytes(bm, bh, d_in, itemsize)

    out = pl.pallas_call(
        functools.partial(_transition_kernel_tiled, mxu_dtype=mxu_dtype),
        out_shape=jax.ShapeDtypeStruct((m, d_in), jnp.float32),  # f32 in-place acc
        grid_spec=pltpu.PrefetchScalarGridSpec(
            num_scalar_prefetch=0,
            grid=(grid_m, h_pad // bh),
            in_specs=[
                pl.BlockSpec((bm, d_in), lambda i, k: (i, 0)),
                pl.BlockSpec((d_in, bh), lambda i, k: (0, k)),
                pl.BlockSpec((1, bh), lambda i, k: (0, k)),
                pl.BlockSpec((bh, d_in), lambda i, k: (k, 0)),
                pl.BlockSpec((1, d_in), lambda i, k: (0, 0)),
            ],
            out_specs=pl.BlockSpec((bm, d_in), lambda i, k: (i, 0)),
        ),
        compiler_params=pltpu.CompilerParams(
            dimension_semantics=("parallel", "arbitrary"),
            vmem_limit_bytes=max(32 * 1024 * 1024,
                                 min(int(vmem_cap * 0.9), int(est * 2))),
        ),
    )(x2, w1, b1, w2, b2)
    return out.astype(x.dtype).reshape(*lead, d_in)


# ---------------------------------------------------------------------------
# Pure-JAX reference (mirrors the PyTorch forward: exact erf GELU, p=0 dropout)
# ---------------------------------------------------------------------------
def reference_forward(x, params):
    w1, b1, w2, b2 = params
    h = jnp.dot(x, w1, precision=jax.lax.Precision.HIGHEST) + b1
    h = jax.nn.gelu(h, approximate=False)
    return jnp.dot(h, w2, precision=jax.lax.Precision.HIGHEST) + b2


if __name__ == "__main__":
    # Transition(d_in=32, n=8): hidden = n * d_in = 256; input (bsz, seq, d_in).
    bsz, seq = 2, 16
    d_in, n_mult = 32, 8
    hidden = n_mult * d_in

    key = jax.random.PRNGKey(0)
    k_x, k_w1, k_b1, k_w2, k_b2 = jax.random.split(key, 5)

    x = jax.random.normal(k_x, (bsz, seq, d_in), dtype=jnp.float32)

    # nn.Linear-style parameters (stored transposed for x @ W^T).  The module's
    # 'final' init zeroes linear_2 -> trivially-zero output, so random weights
    # are used to make the numerical check meaningful.
    std1 = (2.0 / d_in) ** 0.5 / 0.8796256610342398
    w1 = (std1 * jax.random.normal(k_w1, (d_in, hidden))).astype(jnp.float32)
    b1 = (0.02 * jax.random.normal(k_b1, (1, hidden))).astype(jnp.float32)
    std2 = (1.0 / hidden) ** 0.5
    w2 = (std2 * jax.random.normal(k_w2, (hidden, d_in))).astype(jnp.float32)
    b2 = (0.02 * jax.random.normal(k_b2, (1, d_in))).astype(jnp.float32)
    params = (w1, b1, w2, b2)

    y_ref = reference_forward(x, params)

    # Main path: fused 1-D grid, weights resident, bf16 MXU operands.
    # (m=32 -> bm=16 -> two row tiles, so both v7x TCs / pipelining exercised.)
    y = jax.block_until_ready(transition_forward(x, params))
    np.testing.assert_allclose(np.asarray(y), np.asarray(y_ref),
                               rtol=5e-2, atol=5e-2)

    # f32-MXU path: near-exact parity with the PyTorch module.
    y32 = jax.block_until_ready(transition_forward(x, params,
                                                   use_bf16_matmul=False))
    np.testing.assert_allclose(np.asarray(y32), np.asarray(y_ref),
                               rtol=5e-3, atol=5e-3)

    # Tiled-hidden fallback path (accumulates directly into the output block).
    yt = jax.block_until_ready(
        transition_forward(x, params, use_bf16_matmul=False,
                           block_m=16, block_h=128, force_hidden_tiling=True))
    np.testing.assert_allclose(np.asarray(yt), np.asarray(y_ref),
                               rtol=5e-3, atol=5e-3)

    print("KERNEL_OK")
</pallas_src>

<mosaic_0001>
module attributes {stable_mosaic.version = 11 : i64} {
  func.func @_transition_kernel_fused(%arg0: i32, %arg1: memref<16x32xf32, #tpu.memory_space<vmem>>, %arg2: memref<32x256xf32, #tpu.memory_space<vmem>>, %arg3: memref<1x256xf32, #tpu.memory_space<vmem>>, %arg4: memref<256x32xf32, #tpu.memory_space<vmem>>, %arg5: memref<1x32xf32, #tpu.memory_space<vmem>>, %arg6: memref<16x32xf32, #tpu.memory_space<vmem>>) attributes {dimension_semantics = [#tpu.dimension_semantics<parallel>], iteration_bounds = array<i64: 2>, scalar_prefetch = 0 : i64, scratch_operands = 0 : i64, tpu.core_type = #tpu.core_type<tc>, window_params = [{transform_indices = @transform_0, window_bounds = array<i64: 16, 32>}, {pipeline_mode = #tpu.pipeline_mode<synchronous>, transform_indices = @transform_1, window_bounds = array<i64: 32, 256>}, {pipeline_mode = #tpu.pipeline_mode<synchronous>, transform_indices = @transform_2, window_bounds = array<i64: 1, 256>}, {pipeline_mode = #tpu.pipeline_mode<synchronous>, transform_indices = @transform_3, window_bounds = array<i64: 256, 32>}, {pipeline_mode = #tpu.pipeline_mode<synchronous>, transform_indices = @transform_4, window_bounds = array<i64: 1, 32>}, {transform_indices = @transform_5, window_bounds = array<i64: 16, 32>}]} {
    %c0 = arith.constant 0 : index
    %c0_0 = arith.constant 0 : index
    %0 = vector.load %arg1[%c0, %c0_0] : memref<16x32xf32, #tpu.memory_space<vmem>>, vector<16x32xf32>
    %1 = arith.truncf %0 : vector<16x32xf32> to vector<16x32xbf16>
    %c0_1 = arith.constant 0 : index
    %c0_2 = arith.constant 0 : index
    %2 = vector.load %arg2[%c0_1, %c0_2] : memref<32x256xf32, #tpu.memory_space<vmem>>, vector<32x256xf32>
    %3 = arith.truncf %2 : vector<32x256xf32> to vector<32x256xbf16>
    %cst = arith.constant dense<0.000000e+00> : vector<16x256xf32>
    %4 = tpu.matmul %1, %3, %cst {dimension_numbers = #tpu.dot_dimension_numbers<[1], [0], [0], [1], [0, 0, 1, 1], [], []>} : vector<16x32xbf16>, vector<32x256xbf16>, vector<16x256xf32> -> vector<16x256xf32>
    %c0_3 = arith.constant 0 : index
    %c0_4 = arith.constant 0 : index
    %5 = vector.load %arg3[%c0_3, %c0_4] : memref<1x256xf32, #tpu.memory_space<vmem>>, vector<1x256xf32>
    %6 = vector.broadcast %5 : vector<1x256xf32> to vector<16x256xf32>
    %7 = arith.addf %4, %6 : vector<16x256xf32>
    %cst_5 = arith.constant 5.000000e-01 : f32
    %8 = vector.broadcast %cst_5 : f32 to vector<16x256xf32>
    %9 = arith.mulf %8, %7 : vector<16x256xf32>
    %cst_6 = arith.constant 0.707106769 : f32
    %10 = vector.broadcast %cst_6 : f32 to vector<16x256xf32>
    %11 = arith.mulf %7, %10 : vector<16x256xf32>
    %12 = math.absf %11 : vector<16x256xf32>
    %cst_7 = arith.constant 0.327591091 : f32
    %13 = vector.broadcast %cst_7 : f32 to vector<16x256xf32>
    %14 = arith.mulf %13, %12 : vector<16x256xf32>
    %cst_8 = arith.constant 1.000000e+00 : f32
    %15 = vector.broadcast %cst_8 : f32 to vector<16x256xf32>
    %16 = arith.addf %15, %14 : vector<16x256xf32>
    %17 = tpu.reciprocal %16 {approx = true} : vector<16x256xf32> -> vector<16x256xf32>
    %cst_9 = arith.constant 1.06140542 : f32
    %18 = vector.broadcast %cst_9 : f32 to vector<16x256xf32>
    %19 = arith.mulf %18, %17 : vector<16x256xf32>
    %cst_10 = arith.constant -1.45315206 : f32
    %20 = vector.broadcast %cst_10 : f32 to vector<16x256xf32>
    %21 = arith.addf %19, %20 : vector<16x256xf32>
    %22 = arith.mulf %21, %17 : vector<16x256xf32>
    %cst_11 = arith.constant 1.42141378 : f32
    %23 = vector.broadcast %cst_11 : f32 to vector<16x256xf32>
    %24 = arith.addf %22, %23 : vector<16x256xf32>
    %25 = arith.mulf %24, %17 : vector<16x256xf32>
    %cst_12 = arith.constant -0.284496725 : f32
    %26 = vector.broadcast %cst_12 : f32 to vector<16x256xf32>
    %27 = arith.addf %25, %26 : vector<16x256xf32>
    %28 = arith.mulf %27, %17 : vector<16x256xf32>
    %cst_13 = arith.constant 0.254829586 : f32
    %29 = vector.broadcast %cst_13 : f32 to vector<16x256xf32>
    %30 = arith.addf %28, %29 : vector<16x256xf32>
    %31 = arith.mulf %30, %17 : vector<16x256xf32>
    %cst_14 = arith.constant 0.000000e+00 : f32
    %32 = vector.broadcast %cst_14 : f32 to vector<16x256xf32>
    %33 = arith.subf %32, %12 : vector<16x256xf32>
    %34 = arith.mulf %33, %12 : vector<16x256xf32>
    %35 = math.exp %34 : vector<16x256xf32>
    %36 = arith.mulf %31, %35 : vector<16x256xf32>
    %cst_15 = arith.constant 1.000000e+00 : f32
    %37 = vector.broadcast %cst_15 : f32 to vector<16x256xf32>
    %38 = arith.subf %37, %36 : vector<16x256xf32>
    %cst_16 = arith.constant 0.000000e+00 : f32
    %39 = vector.broadcast %cst_16 : f32 to vector<16x256xf32>
    %40 = arith.cmpf olt, %11, %39 : vector<16x256xf32>
    %cst_17 = arith.constant 0.000000e+00 : f32
    %41 = vector.broadcast %cst_17 : f32 to vector<16x256xf32>
    %42 = arith.subf %41, %38 : vector<16x256xf32>
    %43 = arith.select %40, %42, %38 : vector<16x256xi1>, vector<16x256xf32>
    %cst_18 = arith.constant 1.000000e+00 : f32
    %44 = vector.broadcast %cst_18 : f32 to vector<16x256xf32>
    %45 = arith.addf %44, %43 : vector<16x256xf32>
    %46 = arith.mulf %9, %45 : vector<16x256xf32>
    %47 = arith.truncf %46 : vector<16x256xf32> to vector<16x256xbf16>
    %c0_19 = arith.constant 0 : index
    %c0_20 = arith.constant 0 : index
    %48 = vector.load %arg4[%c0_19, %c0_20] : memref<256x32xf32, #tpu.memory_space<vmem>>, vector<256x32xf32>
    %49 = arith.truncf %48 : vector<256x32xf32> to vector<256x32xbf16>
    %cst_21 = arith.constant dense<0.000000e+00> : vector<16x32xf32>
    %50 = tpu.matmul %47, %49, %cst_21 {dimension_numbers = #tpu.dot_dimension_numbers<[1], [0], [0], [1], [0, 0, 1, 1], [], []>} : vector<16x256xbf16>, vector<256x32xbf16>, vector<16x32xf32> -> vector<16x32xf32>
    %c0_22 = arith.constant 0 : index
    %c0_23 = arith.constant 0 : index
    %51 = vector.load %arg5[%c0_22, %c0_23] : memref<1x32xf32, #tpu.memory_space<vmem>>, vector<1x32xf32>
    %52 = vector.broadcast %51 : vector<1x32xf32> to vector<16x32xf32>
    %53 = arith.addf %50, %52 : vector<16x32xf32>
    %c0_24 = arith.constant 0 : index
    %c0_25 = arith.constant 0 : index
    %54 = vector.load %arg6[%c0_24, %c0_25] : memref<16x32xf32, #tpu.memory_space<vmem>>, vector<16x32xf32>
    tpu.vector_store %arg6[%c0_24, %c0_25], %53 {strides = array<i32>} : memref<16x32xf32, #tpu.memory_space<vmem>>, vector<16x32xf32>,
    return
  }
  func.func @transform_0(%arg0: i32) -> (i32, i32) {
    %c0_i32 = arith.constant 0 : i32
    %c0_i32_0 = arith.constant 0 : i32
    return %arg0, %c0_i32 : i32, i32
  }
  func.func @transform_1(%arg0: i32) -> (i32, i32) {
    %c0_i32 = arith.constant 0 : i32
    %c0_i32_0 = arith.constant 0 : i32
    %c0_i32_1 = arith.constant 0 : i32
    return %c0_i32, %c0_i32_0 : i32, i32
  }
  func.func @transform_2(%arg0: i32) -> (i32, i32) {
    %c0_i32 = arith.constant 0 : i32
    %c0_i32_0 = arith.constant 0 : i32
    %c0_i32_1 = arith.constant 0 : i32
    return %c0_i32, %c0_i32_0 : i32, i32
  }
  func.func @transform_3(%arg0: i32) -> (i32, i32) {
    %c0_i32 = arith.constant 0 : i32
    %c0_i32_0 = arith.constant 0 : i32
    %c0_i32_1 = arith.constant 0 : i32
    return %c0_i32, %c0_i32_0 : i32, i32
  }
  func.func @transform_4(%arg0: i32) -> (i32, i32) {
    %c0_i32 = arith.constant 0 : i32
    %c0_i32_0 = arith.constant 0 : i32
    %c0_i32_1 = arith.constant 0 : i32
    return %c0_i32, %c0_i32_0 : i32, i32
  }
  func.func @transform_5(%arg0: i32) -> (i32, i32) {
    %c0_i32 = arith.constant 0 : i32
    %c0_i32_0 = arith.constant 0 : i32
    return %arg0, %c0_i32 : i32, i32
  }
}

</mosaic_0001>

<llo_original>
// kernel: tpu_custom_call.1
$region0: #{tpu_custom_call.1}
  #allocation0 [shape = 'u32[]', space=smem, size = 0x4, offset = 0x4, fixed_abs, tag = 'smem constant byte address 0x4 - core index']
  #allocation1 [shape = 'u32[144,128]{1,0:T(1,128)}', space=vmem, size = 0x12000, scoped, tag = 'internal scratch']
  %s0 = inlined_call_operand.vmem [shape: f32[32,32], index: 0, kind: input, shape index: {}]
  %s1 = inlined_call_operand.vmem [shape: f32[32,256], index: 1, kind: input, shape index: {}]
  %s2 = inlined_call_operand.vmem [shape: f32[1,256], index: 2, kind: input, shape index: {}]
  %s3 = inlined_call_operand.vmem [shape: f32[256,32], index: 3, kind: input, shape index: {}]
  %s4 = inlined_call_operand.vmem [shape: f32[1,32], index: 4, kind: input, shape index: {}]
  %s5 = inlined_call_operand.hbm [shape: f32[32,32], index: 5, kind: output, shape index: {}]
  %s6 = sld [smem:[#allocation0]]
  $region53: #{tpu_custom_call.1} parent=0
    _
  %s8 = ssub.s32 1, %s6
  %s9 = scalar_select 0, %s8, %s6
  $region1: #{tpu_custom_call.1} parent=0
    #allocation2 [shape = 'u8[16384]{0}', space=vmem, size = 0x4000, scoped, tag = 'output window, operand 0']
    #allocation3 [shape = 's32[2]{0}', space=sflag, size = 0x8, scoped, tag = 'scoped memory for tpu_custom_call.1']
    %10 = vsyncpa [#allocation3], 0
    %s11 = scalar_lea.sflag [#allocation3], 1
    %12 = vsyncpa %s11, 0
    loop: start=0, step=1, limit=4
    $region2: #{tpu_custom_call.1} parent=1 // loop_pre_header
      _
    $region3: #{tpu_custom_call.1} parent=1 // loop_header
      %s14 = sphi 0, %s18
      %p15 = scmp.ge.s32.totalorder %s14, 4
      %s24 = sphi 0, %s26
      %s27 = sphi 0, %s24
      %s28 = sphi 0, %s27
      %s44 = sphi 0, %s28
      %s48 = sphi 0, %s48
      %s50 = sphi 0, %s48
      %s51 = sphi 0, %s50
      %s65 = sphi 0, %s51
      %s69 = sphi 0, %s69
      %s71 = sphi 0, %s69
      %s72 = sphi 0, %s71
      %s86 = sphi 0, %s72
      %s90 = sphi 0, %s90
      %s92 = sphi 0, %s90
      %s93 = sphi 0, %s92
      %s107 = sphi 0, %s93
      %s111 = sphi 0, %s111
      %s113 = sphi 0, %s111
      %s114 = sphi 0, %s113
      %s128 = sphi 0, %s114
      %s134 = sphi 0, %s136
      %s137 = sphi 0, %s134
      %s138 = sphi 0, %s137
      %s154 = sphi 0, %s138
    $region4: #{tpu_custom_call.1} parent=1 // loop_header_branch
      %17 = sbr.rel (%p15) target = $region8
    $region5: #{tpu_custom_call.1} parent=1 // loop_body
      %s19 = ssub.s32 %s14, 1
      %s20 = ssub.s32 %s14, 2
      %s21 = sadd.s32 %s14, 1
      %s22 = ssub.s32 %s14, %s21
      %p23 = scmp.eq.s32.totalorder %s22, 0
      %s25 = sadd.s32 %s24, 1
      %s26 = scalar_select %p23, %s24, %s25
      %p29 = pneg %p23
      %p30 = scmp.eq.s32.totalorder %s14, 1
      %p31 = por %p29, %p30
      %p32 = scmp.ne.s32.totalorder %s24, %s27
      %p33 = scmp.eq.s32.totalorder %s14, 0
      %p34 = por %p32, %p33
      %p35 = scmp.ne.s32.totalorder %s24, %s27
      %p36 = scmp.eq.s32.totalorder %s19, 1
      %p37 = por %p35, %p36
      %p38 = scmp.ne.s32.totalorder %s27, %s28
      %p39 = scmp.eq.s32.totalorder %s19, 0
      %p40 = por %p38, %p39
      %p41 = scmp.ne.s32.totalorder %s27, %s28
      %p42 = scmp.eq.s32.totalorder %s20, 1
      %p43 = por %p41, %p42
      %p45 = scmp.ne.s32.totalorder %s28, %s44
      %p46 = scmp.eq.s32.totalorder %s20, 0
      %p47 = por %p45, %p46
      %s49 = sadd.s32 %s48, 1
      %p52 = scmp.eq.s32.totalorder %s14, 1
      %p53 = scmp.ne.s32.totalorder %s48, %s50
      %p54 = scmp.eq.s32.totalorder %s14, 0
      %p55 = por %p53, %p54
      %p56 = scmp.ne.s32.totalorder %s48, %s50
      %p57 = scmp.eq.s32.totalorder %s19, 1
      %p58 = por %p56, %p57
      %p59 = scmp.ne.s32.totalorder %s50, %s51
      %p60 = scmp.eq.s32.totalorder %s19, 0
      %p61 = por %p59, %p60
      %p62 = scmp.ne.s32.totalorder %s50, %s51
      %p63 = scmp.eq.s32.totalorder %s20, 1
      %p64 = por %p62, %p63
      %p66 = scmp.ne.s32.totalorder %s51, %s65
      %p67 = scmp.eq.s32.totalorder %s20, 0
      %p68 = por %p66, %p67
      %s70 = sadd.s32 %s69, 1
      %p73 = scmp.eq.s32.totalorder %s14, 1
      %p74 = scmp.ne.s32.totalorder %s69, %s71
      %p75 = scmp.eq.s32.totalorder %s14, 0
      %p76 = por %p74, %p75
      %p77 = scmp.ne.s32.totalorder %s69, %s71
      %p78 = scmp.eq.s32.totalorder %s19, 1
      %p79 = por %p77, %p78
      %p80 = scmp.ne.s32.totalorder %s71, %s72
      %p81 = scmp.eq.s32.totalorder %s19, 0
      %p82 = por %p80, %p81
      %p83 = scmp.ne.s32.totalorder %s71, %s72
      %p84 = scmp.eq.s32.totalorder %s20, 1
      %p85 = por %p83, %p84
      %p87 = scmp.ne.s32.totalorder %s72, %s86
      %p88 = scmp.eq.s32.totalorder %s20, 0
      %p89 = por %p87, %p88
      %s91 = sadd.s32 %s90, 1
      %p94 = scmp.eq.s32.totalorder %s14, 1
      %p95 = scmp.ne.s32.totalorder %s90, %s92
      %p96 = scmp.eq.s32.totalorder %s14, 0
      %p97 = por %p95, %p96
      %p98 = scmp.ne.s32.totalorder %s90, %s92
      %p99 = scmp.eq.s32.totalorder %s19, 1
      %p100 = por %p98, %p99
      %p101 = scmp.ne.s32.totalorder %s92, %s93
      %p102 = scmp.eq.s32.totalorder %s19, 0
      %p103 = por %p101, %p102
      %p104 = scmp.ne.s32.totalorder %s92, %s93
      %p105 = scmp.eq.s32.totalorder %s20, 1
      %p106 = por %p104, %p105
      %p108 = scmp.ne.s32.totalorder %s93, %s107
      %p109 = scmp.eq.s32.totalorder %s20, 0
      %p110 = por %p108, %p109
      %s112 = sadd.s32 %s111, 1
      %p115 = scmp.eq.s32.totalorder %s14, 1
      %p116 = scmp.ne.s32.totalorder %s111, %s113
      %p117 = scmp.eq.s32.totalorder %s14, 0
      %p118 = por %p116, %p117
      %p119 = scmp.ne.s32.totalorder %s111, %s113
      %p120 = scmp.eq.s32.totalorder %s19, 1
      %p121 = por %p119, %p120
      %p122 = scmp.ne.s32.totalorder %s113, %s114
      %p123 = scmp.eq.s32.totalorder %s19, 0
      %p124 = por %p122, %p123
      %p125 = scmp.ne.s32.totalorder %s113, %s114
      %p126 = scmp.eq.s32.totalorder %s20, 1
      %p127 = por %p125, %p126
      %p129 = scmp.ne.s32.totalorder %s114, %s128
      %p130 = scmp.eq.s32.totalorder %s20, 0
      %p131 = por %p129, %p130
      %s132 = ssub.s32 %s14, %s21
      %p133 = scmp.eq.s32.totalorder %s132, 0
      %s135 = sadd.s32 %s134, 1
      %s136 = scalar_select %p133, %s134, %s135
      %p139 = pneg %p133
      %p140 = scmp.eq.s32.totalorder %s14, 1
      %p141 = por %p139, %p140
      %p142 = scmp.ne.s32.totalorder %s134, %s137
      %p143 = scmp.eq.s32.totalorder %s14, 0
      %p144 = por %p142, %p143
      %p145 = scmp.ne.s32.totalorder %s134, %s137
      %p146 = scmp.eq.s32.totalorder %s19, 1
      %p147 = por %p145, %p146
      %p148 = scmp.ne.s32.totalorder %s137, %s138
      %p149 = scmp.eq.s32.totalorder %s19, 0
      %p150 = por %p148, %p149
      %p151 = scmp.ne.s32.totalorder %s137, %s138
      %p152 = scmp.eq.s32.totalorder %s20, 1
      %p153 = por %p151, %p152
      %p155 = scmp.ne.s32.totalorder %s138, %s154
      %p156 = scmp.eq.s32.totalorder %s20, 0
      %p157 = por %p155, %p156
      %p158 = scmp.le.s32.totalorder 1, %s14
      %p159 = scmp.lt.s32.totalorder %s14, 3
      %p160 = pnand %p158, %p159
      %p161 = pneg %p160
      // Predicated region
      $region9: #{tpu_custom_call.1} parent=5 // pred_check
        _
      $region10: #{tpu_custom_call.1} parent=5 // pred_check_branch
        %163 = sbr.rel (%p160) target = $region12
      $region11: #{tpu_custom_call.1} parent=5 // pred_region
        %s164 = ssub.s32 %s14, 1
        // Predicated region
        $region13: #{tpu_custom_call.1} parent=11 // pred_check
          %p165 = pneg %p61
        $region14: #{tpu_custom_call.1} parent=11 // pred_check_branch
          %167 = sbr.rel (%p165) target = $region16
        $region15: #{tpu_custom_call.1} parent=11 // pred_region
          _
        $region16: #{tpu_custom_call.1} parent=11 // pred_fallthru
          _
        // Predicated region
        $region17: #{tpu_custom_call.1} parent=11 // pred_check
          %p168 = pneg %p82
        $region18: #{tpu_custom_call.1} parent=11 // pred_check_branch
          %170 = sbr.rel (%p168) target = $region20
        $region19: #{tpu_custom_call.1} parent=11 // pred_region
          _
        $region20: #{tpu_custom_call.1} parent=11 // pred_fallthru
          _
        // Predicated region
        $region21: #{tpu_custom_call.1} parent=11 // pred_check
          %p171 = pneg %p103
        $region22: #{tpu_custom_call.1} parent=11 // pred_check_branch
          %173 = sbr.rel (%p171) target = $region24
        $region23: #{tpu_custom_call.1} parent=11 // pred_region
          _
        $region24: #{tpu_custom_call.1} parent=11 // pred_fallthru
          _
        // Predicated region
        $region25: #{tpu_custom_call.1} parent=11 // pred_check
          %p174 = pneg %p124
        $region26: #{tpu_custom_call.1} parent=11 // pred_check_branch
          %176 = sbr.rel (%p174) target = $region28
        $region27: #{tpu_custom_call.1} parent=11 // pred_region
          _
        $region28: #{tpu_custom_call.1} parent=11 // pred_fallthru
          _
      $region12: #{tpu_custom_call.1} parent=5 // pred_fallthru
        _
      %p177 = scmp.lt.s32.totalorder %s14, 2
      // Predicated region
      $region29: #{tpu_custom_call.1} parent=5 // pred_check
        %p178 = pneg %p177
      $region30: #{tpu_custom_call.1} parent=5 // pred_check_branch
        %180 = sbr.rel (%p178) target = $region32
      $region31: #{tpu_custom_call.1} parent=5 // pred_region
        // Predicated region
        $region33: #{tpu_custom_call.1} parent=31 // pred_check
          %p181 = pneg %p34
        $region34: #{tpu_custom_call.1} parent=31 // pred_check_branch
          %183 = sbr.rel (%p181) target = $region36
        $region35: #{tpu_custom_call.1} parent=31 // pred_region
          %s184 = smul.u32 2, %s14
          %p185 = scmp.lt.s32.totalorder %s184, 3
          %s186 = scalar_select %p185, %s184, 3
          %s187 = smul.addr %s186, 8
          %s188 = scalar_lea.vmem %s0, %s187
          %s189 = smul.u32 2, %s14
        $region36: #{tpu_custom_call.1} parent=31 // pred_fallthru
          _
      $region32: #{tpu_custom_call.1} parent=5 // pred_fallthru
        _
      %p190 = scmp.le.s32.totalorder 1, %s14
      %p191 = scmp.lt.s32.totalorder %s14, 3
      %p192 = pnand %p190, %p191
      %p193 = pneg %p192
      // Predicated region
      $region37: #{tpu_custom_call.1} parent=5 // pred_check
        _
      $region38: #{tpu_custom_call.1} parent=5 // pred_check_branch
        %195 = sbr.rel (%p192) target = $region40
      $region39: #{tpu_custom_call.1} parent=5 // pred_region
        %s196 = ssub.s32 %s14, 1
        %s197 = smul.u32 2, %s19
        %p198 = scmp.lt.s32.totalorder %s197, 3
        %s199 = scalar_select %p198, %s197, 3
        %s200 = smul.addr %s199, 8
        %s201 = scalar_lea.vmem %s0, %s200
        %p202 = pneg %p40
        %p203 = pneg %p37
        %p204 = pneg %p61
        %p205 = pneg %p58
        %p206 = pneg %p82
        %p207 = pneg %p79
        %p208 = pneg %p103
        %p209 = pneg %p100
        %p210 = pneg %p124
        %p211 = pneg %p121
        %p212 = pneg %p150
        %p213 = pneg %p147
        %s214 = sand.u32 %s137, 1
        %s215 = scalar_lea.sflag [#allocation3], %s214
        %s216 = sand.u32 %s137, 1
        %s217 = smul.addr %s216, 16
        %s218 = scalar_lea.vmem [#allocation2], %s217
        %s219 = smul.u32 2, %s19
        %p220 = scmp.lt.s32.totalorder %s219, 3
        %s221 = scalar_select %p220, %s219, 3
        %s222 = smul.addr %s221, 8
        %s223 = scalar_lea.vmem %s0, %s222
        %s224 = smul.u32 2, %s19
        %s225 = smul.u32 2, %s19
        %v227 = vld [vmem:[%s223] sm:$0xff]
        %v228 = vld [vmem:[%s223 + $0x8] sm:$0xff]
        %v229 = vpack.c.bf16 %v228, %v227
        %v230 = vld [vmem:[%s1] sm:$0xff]
        %v231 = vld [vmem:[%s1 + $0x8] sm:$0xff]
        %v232 = vld [vmem:[%s1 + $0x10] sm:$0xff]
        %v233 = vld [vmem:[%s1 + $0x18] sm:$0xff]
        %v234 = vld [vmem:[%s1 + $0x20] sm:$0xff]
        %v235 = vld [vmem:[%s1 + $0x28] sm:$0xff]
        %v236 = vld [vmem:[%s1 + $0x30] sm:$0xff]
        %v237 = vld [vmem:[%s1 + $0x38] sm:$0xff]
        %v238 = vpack.c.bf16 %v232, %v230
        %v239 = vpack.c.bf16 %v233, %v231
        %v240 = vpack.c.bf16 %v236, %v234
        %v241 = vpack.c.bf16 %v237, %v235
        %v242 = vld [vmem:[%s2] sm:$0x3]
        %v244 = vlaneseq
        %v245 = vshrl.u32 %v244, 7
        %v246 = vsub.s32 0, %v245
        %v247 = vrot.slane %v242, %v246
        %v248 = vlaneseq
        %v249 = vshrl.u32 %v248, 7
        %v250 = vsub.s32 1, %v249
        %v251 = vrot.slane %v242, %v250
        %vm254 = vcmask 261120
        %v256 = vsel %vm254, %v229, 0
        %258 = vmatprep.subr.bf16.mxu0 0
        %259 = vmatpush1.bf16.msra.mxu0 0
        %260 = vmatprep.subr.bf16.mxu0 0
        %261 = vmatpush1.bf16.msra.mxu0 0
        %262 = vmatprep.subr.bf16.mxu0 0
        %263 = vmatpush1.bf16.msra.mxu0 0
        %264 = vmatprep.subr.bf16.mxu0 0
        %265 = vmatpush1.bf16.msra.mxu0 0
        %266 = vmatprep.subr.bf16.mxu0 0
        %267 = vmatpush1.bf16.msra.mxu0 0
        %268 = vmatprep.subr.bf16.mxu0 0
        %269 = vmatpush1.bf16.msra.mxu0 0
        %270 = vmatprep.subr.bf16.mxu0 %v241
        %271 = vmatpush1.bf16.msra.mxu0 %v240
        %272 = vmatprep.subr.bf16.mxu0 %v239
        %273 = vmatpush1.bf16.msra.mxu0 %v238
        %274 = vmatprep.subr.bf16.mxu0 0
        %275 = vmatpush2.bf16.msra.mxu0 0
        %276 = vmatprep.subr.bf16.mxu0 0
        %277 = vmatpush2.bf16.msra.mxu0 0
        %278 = vmatprep.subr.bf16.mxu0 0
        %279 = vmatpush2.bf16.msra.mxu0 0
        %280 = vmatprep.subr.bf16.mxu0 0
        %281 = vmatpush2.bf16.msra.mxu0 0
        %282 = vmatprep.subr.bf16.mxu0 0
        %283 = vmatpush2.bf16.msra.mxu0 0
        %284 = vmatprep.subr.bf16.mxu0 0
        %285 = vmatpush2.bf16.msra.mxu0 0
        %286 = vmatprep.subr.bf16.mxu0 0
        %287 = vmatpush2.bf16.msra.mxu0 0
        %288 = vmatprep.subr.bf16.mxu0 0
        %289 = vmatpush2.bf16.msra.mxu0 0
        %290 = vmatprep.mubr.bf16.mxu0 0
        %291 = vmatmul.mubr.bf16.gmra.mxu0 %v256
        %v292 = vpop.f32.mrf.mxu0
        %v293 = vadd.f32 %v247, %v292
        %v294 = vpop.f32.mrf.mxu0
        %v295 = vadd.f32 %v251, %v294
        %v296 = vpop.f32.mrf.mxu0
        %v297 = vadd.f32 %v247, %v296
        %v298 = vpop.f32.mrf.mxu0
        %v299 = vadd.f32 %v251, %v298
        %300 = vdwg.mxu0
        %v301 = vmul.f32 %v293, 0.5
        %v302 = vmul.f32 %v295, 0.5
        %v303 = vmul.f32 %v297, 0.5
        %v304 = vmul.f32 %v299, 0.5
        %v305 = vmul.f32 %v293, 0.70710677
        %v306 = vmul.f32 %v295, 0.70710677
        %v307 = vmul.f32 %v297, 0.70710677
        %v308 = vmul.f32 %v299, 0.70710677
        %v309 = vand.u32 2147483647, %v305
        %v310 = vand.u32 2147483647, %v306
        %v311 = vand.u32 2147483647, %v307
        %v312 = vand.u32 2147483647, %v308
        %v313 = vmul.f32 %v309, 0.3275911
        %v314 = vmul.f32 %v310, 0.3275911
        %v315 = vmul.f32 %v311, 0.3275911
        %v316 = vmul.f32 %v312, 0.3275911
        %v317 = vadd.f32 %v313, 1.0
        %v318 = vadd.f32 %v314, 1.0
        %v319 = vadd.f32 %v315, 1.0
        %v320 = vadd.f32 %v316, 1.0
        %v321 = vrcp.pop %v317
        %v322 = vrcp.pop %v318
        %v323 = vrcp.pop %v319
        %v324 = vrcp.pop %v320
        %v325 = vmul.f32 %v321, 1.0614054
        %v326 = vmul.f32 %v322, 1.0614054
        %v327 = vmul.f32 %v323, 1.0614054
        %v328 = vmul.f32 %v324, 1.0614054
        %v329 = vadd.f32 %v325, -1.4531521
        %v330 = vadd.f32 %v326, -1.4531521
        %v331 = vadd.f32 %v327, -1.4531521
        %v332 = vadd.f32 %v328, -1.4531521
        %v333 = vmul.f32 %v329, %v321
        %v334 = vmul.f32 %v330, %v322
        %v335 = vmul.f32 %v331, %v323
        %v336 = vmul.f32 %v332, %v324
        %v337 = vadd.f32 %v333, 1.4214138
        %v338 = vadd.f32 %v334, 1.4214138
        %v339 = vadd.f32 %v335, 1.4214138
        %v340 = vadd.f32 %v336, 1.4214138
        %v341 = vmul.f32 %v337, %v321
        %v342 = vmul.f32 %v338, %v322
        %v343 = vmul.f32 %v339, %v323
        %v344 = vmul.f32 %v340, %v324
        %v345 = vadd.f32 %v341, -0.28449672
        %v346 = vadd.f32 %v342, -0.28449672
        %v347 = vadd.f32 %v343, -0.28449672
        %v348 = vadd.f32 %v344, -0.28449672
        %v349 = vmul.f32 %v345, %v321
        %v350 = vmul.f32 %v346, %v322
        %v351 = vmul.f32 %v347, %v323
        %v352 = vmul.f32 %v348, %v324
        %v353 = vadd.f32 %v349, 0.2548296
        %v354 = vadd.f32 %v350, 0.2548296
        %v355 = vadd.f32 %v351, 0.2548296
        %v356 = vadd.f32 %v352, 0.2548296
        %v357 = vmul.f32 %v353, %v321
        %v358 = vmul.f32 %v354, %v322
        %v359 = vmul.f32 %v355, %v323
        %v360 = vmul.f32 %v356, %v324
        %v361 = vsub.f32 0.0, %v309
        %v362 = vsub.f32 0.0, %v310
        %v363 = vsub.f32 0.0, %v311
        %v364 = vsub.f32 0.0, %v312
        %v365 = vmul.f32 %v361, %v309
        %v366 = vmul.f32 %v362, %v310
        %v367 = vmul.f32 %v363, %v311
        %v368 = vmul.f32 %v364, %v312
        %v369 = vmul.f32 %v365, 1.442695
        %v370 = vpow.pop %v369
        %v371 = vmul.f32 %v366, 1.442695
        %v372 = vpow.pop %v371
        %v373 = vmul.f32 %v367, 1.442695
        %v374 = vpow.pop %v373
        %v375 = vmul.f32 %v368, 1.442695
        %v376 = vpow.pop %v375
        %v377 = vmul.f32 %v357, %v370
        %v378 = vmul.f32 %v358, %v372
        %v379 = vmul.f32 %v359, %v374
        %v380 = vmul.f32 %v360, %v376
        %v381 = vsub.f32 1.0, %v377
        %v382 = vsub.f32 1.0, %v378
        %v383 = vsub.f32 1.0, %v379
        %v384 = vsub.f32 1.0, %v380
        %vm385 = vcmp.lt.f32.partialorder %v305, 0.0
        %vm386 = vcmp.lt.f32.partialorder %v306, 0.0
        %vm387 = vcmp.lt.f32.partialorder %v307, 0.0
        %vm388 = vcmp.lt.f32.partialorder %v308, 0.0
        %v389 = vsub.f32 0.0, %v381
        %v390 = vsub.f32 0.0, %v382
        %v391 = vsub.f32 0.0, %v383
        %v392 = vsub.f32 0.0, %v384
        %v393 = vsel %vm385, %v389, %v381
        %v394 = vsel %vm386, %v390, %v382
        %v395 = vsel %vm387, %v391, %v383
        %v396 = vsel %vm388, %v392, %v384
        %v397 = vadd.f32 %v393, 1.0
        %v398 = vadd.f32 %v394, 1.0
        %v399 = vadd.f32 %v395, 1.0
        %v400 = vadd.f32 %v396, 1.0
        %v401 = vmul.f32 %v301, %v397
        %v402 = vmul.f32 %v302, %v398
        %v403 = vmul.f32 %v303, %v399
        %v404 = vmul.f32 %v304, %v400
        %v405 = vpack.c.bf16 %v403, %v401
        %v406 = vpack.c.bf16 %v404, %v402
        %v407 = vld [vmem:[%s3] sm:$0xff]
        %v408 = vld [vmem:[%s3 + $0x8] sm:$0xff]
        %v409 = vld [vmem:[%s3 + $0x10] sm:$0xff]
        %v410 = vld [vmem:[%s3 + $0x18] sm:$0xff]
        %v411 = vld [vmem:[%s3 + $0x20] sm:$0xff]
        %v412 = vld [vmem:[%s3 + $0x28] sm:$0xff]
        %v413 = vld [vmem:[%s3 + $0x30] sm:$0xff]
        %v414 = vld [vmem:[%s3 + $0x38] sm:$0xff]
        %v415 = vld [vmem:[%s3 + $0x40] sm:$0xff]
        %v416 = vld [vmem:[%s3 + $0x48] sm:$0xff]
        %v417 = vld [vmem:[%s3 + $0x50] sm:$0xff]
        %v418 = vld [vmem:[%s3 + $0x58] sm:$0xff]
        %v419 = vld [vmem:[%s3 + $0x60] sm:$0xff]
        %v420 = vld [vmem:[%s3 + $0x68] sm:$0xff]
        %v421 = vld [vmem:[%s3 + $0x70] sm:$0xff]
        %v422 = vld [vmem:[%s3 + $0x78] sm:$0xff]
        %v423 = vld [vmem:[%s3 + $0x80] sm:$0xff]
        %v424 = vld [vmem:[%s3 + $0x88] sm:$0xff]
        %v425 = vld [vmem:[%s3 + $0x90] sm:$0xff]
        %v426 = vld [vmem:[%s3 + $0x98] sm:$0xff]
        %v427 = vld [vmem:[%s3 + $0xa0] sm:$0xff]
        %v428 = vld [vmem:[%s3 + $0xa8] sm:$0xff]
        %v429 = vld [vmem:[%s3 + $0xb0] sm:$0xff]
        %v430 = vld [vmem:[%s3 + $0xb8] sm:$0xff]
        %v431 = vld [vmem:[%s3 + $0xc0] sm:$0xff]
        %v432 = vld [vmem:[%s3 + $0xc8] sm:$0xff]
        %v433 = vld [vmem:[%s3 + $0xd0] sm:$0xff]
        %v434 = vld [vmem:[%s3 + $0xd8] sm:$0xff]
        %v435 = vld [vmem:[%s3 + $0xe0] sm:$0xff]
        %v436 = vld [vmem:[%s3 + $0xe8] sm:$0xff]
        %v437 = vld [vmem:[%s3 + $0xf0] sm:$0xff]
        %v438 = vld [vmem:[%s3 + $0xf8] sm:$0xff]
        %v439 = vpack.c.bf16 %v408, %v407
        %v440 = vpack.c.bf16 %v410, %v409
        %v441 = vpack.c.bf16 %v412, %v411
        %v442 = vpack.c.bf16 %v414, %v413
        %v443 = vpack.c.bf16 %v416, %v415
        %v444 = vpack.c.bf16 %v418, %v417
        %v445 = vpack.c.bf16 %v420, %v419
        %v446 = vpack.c.bf16 %v422, %v421
        %v447 = vpack.c.bf16 %v424, %v423
        %v448 = vpack.c.bf16 %v426, %v425
        %v449 = vpack.c.bf16 %v428, %v427
        %v450 = vpack.c.bf16 %v430, %v429
        %v451 = vpack.c.bf16 %v432, %v431
        %v452 = vpack.c.bf16 %v434, %v433
        %v453 = vpack.c.bf16 %v436, %v435
        %v454 = vpack.c.bf16 %v438, %v437
        %v455 = vld [vmem:[%s4] sm:$0x1]
        %v457 = vlaneseq
        %v458 = vshrl.u32 %v457, 7
        %v459 = vsub.s32 0, %v458
        %v460 = vrot.slane %v455, %v459
        %462 = vmatprep.subr.bf16.mxu0 0
        %463 = vmatpush1.bf16.msra.mxu0 %v446
        %464 = vmatprep.subr.bf16.mxu0 0
        %465 = vmatpush1.bf16.msra.mxu0 %v445
        %466 = vmatprep.subr.bf16.mxu0 0
        %467 = vmatpush1.bf16.msra.mxu0 %v444
        %468 = vmatprep.subr.bf16.mxu0 0
        %469 = vmatpush1.bf16.msra.mxu0 %v443
        %470 = vmatprep.subr.bf16.mxu0 0
        %471 = vmatpush1.bf16.msra.mxu0 %v442
        %472 = vmatprep.subr.bf16.mxu0 0
        %473 = vmatpush1.bf16.msra.mxu0 %v441
        %474 = vmatprep.subr.bf16.mxu0 0
        %475 = vmatpush1.bf16.msra.mxu0 %v440
        %476 = vmatprep.subr.bf16.mxu0 0
        %477 = vmatpush1.bf16.msra.mxu0 %v439
        %478 = vmatprep.subr.bf16.mxu0 0
        %479 = vmatpush2.bf16.msra.mxu0 %v454
        %480 = vmatprep.subr.bf16.mxu0 0
        %481 = vmatpush2.bf16.msra.mxu0 %v453
        %482 = vmatprep.subr.bf16.mxu0 0
        %483 = vmatpush2.bf16.msra.mxu0 %v452
        %484 = vmatprep.subr.bf16.mxu0 0
        %485 = vmatpush2.bf16.msra.mxu0 %v451
        %486 = vmatprep.subr.bf16.mxu0 0
        %487 = vmatpush2.bf16.msra.mxu0 %v450
        %488 = vmatprep.subr.bf16.mxu0 0
        %489 = vmatpush2.bf16.msra.mxu0 %v449
        %490 = vmatprep.subr.bf16.mxu0 0
        %491 = vmatpush2.bf16.msra.mxu0 %v448
        %492 = vmatprep.subr.bf16.mxu0 0
        %493 = vmatpush2.bf16.msra.mxu0 %v447
        %494 = vmatprep.mubr.bf16.mxu0 %v406
        %495 = vmatmul.mubr.bf16.gmra.mxu0 %v405
        %v496 = vpop.f32.mrf.mxu0
        %v497 = vadd.f32 %v460, %v496
        %v498 = vpop.f32.mrf.mxu0
        %v499 = vpop.f32.mrf.mxu0
        %v500 = vadd.f32 %v460, %v499
        %v501 = vpop.f32.mrf.mxu0
        %502 = vdwg.mxu0
        %503 = vst.msk [vmem:[%s218] sm:$0xff] %vm254, %v497
        %504 = vst.msk [vmem:[%s218 + $0x8] sm:$0xff] %vm254, %v500
        %s505 = sand.u32 %s137, 1
        %s506 = scalar_lea.sflag [#allocation3], %s505
        %s507 = sand.u32 %s137, 1
        %s508 = smul.addr %s507, 16
        %s509 = scalar_lea.vmem [#allocation2], %s508
        // Predicated region
        $region41: #{tpu_custom_call.1} parent=39 // pred_check
          %p510 = pneg %p147
        $region42: #{tpu_custom_call.1} parent=39 // pred_check_branch
          %512 = sbr.rel (%p510) target = $region44
        $region43: #{tpu_custom_call.1} parent=39 // pred_region
          %s513 = smul.u32 2, %s19
          %s515 = ssub.s32 256, 256
          %516 = vsyncadd %s506, %s515
          %s517 = smul.addr %s513, 128
          %s518 = scalar_lea.hbm %s5, %s517
          %s519 = sshll.u32 %s509, 4
          %s520 = int_to_ptr.vmem [resolvable:$true] %s519
          %525 = dma.vmem_to_hbm [thread:$0]  %s520, 256, %s518, %s506, 128, 128, 8
        $region44: #{tpu_custom_call.1} parent=39 // pred_fallthru
          _
      $region40: #{tpu_custom_call.1} parent=5 // pred_fallthru
        _
      %p526 = scmp.le.s32.totalorder 2, %s14
      // Predicated region
      $region45: #{tpu_custom_call.1} parent=5 // pred_check
        %p527 = pneg %p526
      $region46: #{tpu_custom_call.1} parent=5 // pred_check_branch
        %529 = sbr.rel (%p527) target = $region48
      $region47: #{tpu_custom_call.1} parent=5 // pred_region
        %s530 = ssub.s32 %s14, 2
        // Predicated region
        $region49: #{tpu_custom_call.1} parent=47 // pred_check
          %p531 = pneg %p153
        $region50: #{tpu_custom_call.1} parent=47 // pred_check_branch
          %533 = sbr.rel (%p531) target = $region52
        $region51: #{tpu_custom_call.1} parent=47 // pred_region
          %s534 = sand.u32 %s138, 1
          %s535 = scalar_lea.sflag [#allocation3], %s534
          %s536 = sand.u32 %s138, 1
          %s537 = smul.addr %s536, 16
          %s538 = scalar_lea.vmem [#allocation2], %s537
          %539 = dma.done %s535, 256
        $region52: #{tpu_custom_call.1} parent=47 // pred_fallthru
          _
      $region48: #{tpu_custom_call.1} parent=5 // pred_fallthru
        _
    $region6: #{tpu_custom_call.1} parent=1 // loop_footer
      %s18 = sadd.s32 1, %s14
    $region7: #{tpu_custom_call.1} parent=1 // loop_footer_branch
      %13 = sbr.rel target = $region3
    $region8: #{tpu_custom_call.1} parent=1 // loop_exit
      _
    %540 = vsyncpa [#allocation3], 1
    %s541 = scalar_lea.sflag [#allocation3], 1
    %542 = vsyncpa %s541, 1

</llo_original>
